<compile_context>
chip_gen: v7x
topology: tpu7x:2x2x1
jax: 0.10.0
libtpu: 0.0.40
codegen_flags: <defaults>
</compile_context>

<pallas_src>
import numpy as np
import jax
import jax.numpy as jnp
from jax.experimental import pallas as pl
from jax.experimental.pallas import tpu as pltpu


# ----------------------------------------------------------------------------
# Fast path: fully-static unrolled kernel (name_lens baked in, no tables).
# ----------------------------------------------------------------------------
def _make_static_prompt_kernel(n_cls, n_ctx, suffix_len, d, name_lens,
                               position, ctx_shared):
    total = 1 + n_ctx + suffix_len
    half = n_ctx // 2

    def kernel(prefix_ref, ctx_ref, suffix_ref, out_ref):
        # prefix_ref : (n_cls, 1, d)               VMEM
        # ctx_ref    : (1 | n_cls, n_ctx, d)       VMEM (1 when ctx is shared)
        # suffix_ref : (n_cls, suffix_len, d)      VMEM
        # out_ref    : (n_cls, total, d)           VMEM
        # Row 0 is always the prefix (SOS embedding): vectorized copy.
        out_ref[:, 0:1, :] = prefix_ref[...]

        if position == 'end':
            # Fully class-independent layout: [prefix | ctx | suffix].
            if ctx_shared:
                out_ref[:, 1:1 + n_ctx, :] = jnp.broadcast_to(
                    ctx_ref[...], (n_cls, n_ctx, d))
            else:
                out_ref[:, 1:1 + n_ctx, :] = ctx_ref[...]
            out_ref[:, 1 + n_ctx:, :] = suffix_ref[...]
            return

        if position == 'middle' and half > 0:
            # Rows 1 .. 1+half are ctx[:half] for every class: vectorized.
            if ctx_shared:
                out_ref[:, 1:1 + half, :] = jnp.broadcast_to(
                    ctx_ref[:, :half, :], (n_cls, half, d))
            else:
                out_ref[:, 1:1 + half, :] = ctx_ref[:, :half, :]

        # Per-class splice: everything is static, so these are plain
        # contiguous block copies (one read + one write per row).
        for c in range(n_cls):
            nl = int(name_lens[c])
            cc = 0 if ctx_shared else c
            if position == 'middle':
                if nl > 0:
                    out_ref[c, 1 + half:1 + half + nl, :] = suffix_ref[c, :nl, :]
                if n_ctx - half > 0:
                    out_ref[c, 1 + half + nl:1 + n_ctx + nl, :] = \
                        ctx_ref[cc, half:, :]
                if suffix_len - nl > 0:
                    out_ref[c, 1 + n_ctx + nl:, :] = suffix_ref[c, nl:, :]
            else:  # 'front'
                if nl > 0:
                    out_ref[c, 1:1 + nl, :] = suffix_ref[c, :nl, :]
                if n_ctx > 0:
                    out_ref[c, 1 + nl:1 + nl + n_ctx, :] = ctx_ref[cc, :, :]
                if suffix_len - nl > 0:
                    out_ref[c, 1 + nl + n_ctx:, :] = suffix_ref[c, nl:, :]

    return kernel


# ----------------------------------------------------------------------------
# Fallback path: class-tiled, SMEM-table-driven kernel (for large n_cls).
# ----------------------------------------------------------------------------
def _make_tiled_prompt_kernel(c_tile, total, n_ctx, suffix_len, d, half,
                              position, ctx_shared):
    def kernel(sel_ref, row_ref, prefix_ref, ctx_ref, suffix_ref, out_ref):
        # sel_ref / row_ref : SMEM int32, flat (n_cls_padded * total,)
        # prefix_ref        : (c_tile, 1, d)               VMEM
        # ctx_ref           : (1 | c_tile, n_ctx, d)       VMEM
        # suffix_ref        : (c_tile, suffix_len, d)      VMEM
        # out_ref           : (c_tile, total, d)           VMEM
        t = pl.program_id(0)

        # Row 0 is always the prefix (SOS embedding): vectorized copy.
        out_ref[:, 0:1, :] = prefix_ref[...]

        if position == 'end':
            if ctx_shared:
                out_ref[:, 1:1 + n_ctx, :] = jnp.broadcast_to(
                    ctx_ref[...], (c_tile, n_ctx, d))
            else:
                out_ref[:, 1:1 + n_ctx, :] = ctx_ref[...]
            out_ref[:, 1 + n_ctx:, :] = suffix_ref[...]
            return

        if position == 'middle':
            if half > 0:
                if ctx_shared:
                    out_ref[:, 1:1 + half, :] = jnp.broadcast_to(
                        ctx_ref[:, :half, :], (c_tile, half, d))
                else:
                    out_ref[:, 1:1 + half, :] = ctx_ref[:, :half, :]
            var_start = 1 + half
        else:  # 'front'
            var_start = 1

        # Variable region: per class, each row comes from either ctx or suffix
        # at a class-dependent source row, driven by the SMEM tables.
        for c in range(c_tile):
            base = (t * c_tile + c) * total
            for r in range(var_start, total):
                sel = sel_ref[base + r]                 # 1 -> ctx, 0 -> suffix
                row = row_ref[base + r]                 # row within source
                ci = jnp.minimum(row, n_ctx - 1)        # keep reads in-bounds
                si = jnp.minimum(row, suffix_len - 1)
                from_ctx = ctx_ref[0 if ctx_shared else c, pl.ds(ci, 1), :]
                from_suf = suffix_ref[c, pl.ds(si, 1), :]
                out_ref[c, r:r + 1, :] = jnp.where(sel == 1, from_ctx, from_suf)

    return kernel


# ----------------------------------------------------------------------------
# Host-side static permutation tables for the tiled fallback path.
# ----------------------------------------------------------------------------
def _build_gather_tables(n_cls, n_ctx, suffix_len, name_lens, position,
                         n_cls_padded):
    """sel[c, r] (1 -> ctx, 0 -> suffix), row[c, r] (row within selected
    source) for output rows r >= 1 (row 0 is always the prefix).  Flattened to
    1D so SMEM padding stays tiny."""
    total = 1 + n_ctx + suffix_len
    half = n_ctx // 2
    sel = np.zeros((n_cls_padded, total), np.int32)
    row = np.zeros((n_cls_padded, total), np.int32)
    for i in range(n_cls):
        nl = int(name_lens[i])
        if not (0 <= nl <= suffix_len):
            raise ValueError(f"name_lens[{i}]={nl} not in [0, {suffix_len}]")
        if position == 'end':
            order = ([(1, k) for k in range(n_ctx)]
                     + [(0, k) for k in range(suffix_len)])
        elif position == 'middle':
            order = ([(1, k) for k in range(half)]
                     + [(0, k) for k in range(nl)]
                     + [(1, k) for k in range(half, n_ctx)]
                     + [(0, k) for k in range(nl, suffix_len)])
        elif position == 'front':
            order = ([(0, k) for k in range(nl)]
                     + [(1, k) for k in range(n_ctx)]
                     + [(0, k) for k in range(nl, suffix_len)])
        else:
            raise ValueError(position)
        for r, (s, k) in enumerate(order, start=1):
            sel[i, r] = s
            row[i, r] = k
    return sel.reshape(-1), row.reshape(-1)


# ----------------------------------------------------------------------------
# Wrapper reproducing PromptLearner.forward().
# ----------------------------------------------------------------------------
def prompt_learner_forward(ctx, token_prefix, token_suffix, name_lens,
                           class_token_position='middle', class_tile=None,
                           static_unroll_limit=32):
    """ctx: (n_ctx, D) generic context or (n_cls, n_ctx, D) class-specific.
    token_prefix: (n_cls, 1, D); token_suffix: (n_cls, suffix_len, D).
    name_lens: static python ints per class (same as the PyTorch module).
    returns: (n_cls, 1 + n_ctx + suffix_len, D)."""
    if class_token_position not in ('end', 'middle', 'front'):
        raise ValueError(class_token_position)
    n_cls = token_prefix.shape[0]
    d = token_prefix.shape[-1]
    ctx_shared = (ctx.ndim == 2)
    n_ctx = ctx.shape[0] if ctx_shared else ctx.shape[1]
    suffix_len = token_suffix.shape[1]
    total = 1 + n_ctx + suffix_len
    half = n_ctx // 2

    itemsize = jnp.dtype(token_prefix.dtype).itemsize
    cost = pl.CostEstimate(flops=0, transcendentals=0,
                           bytes_accessed=2 * n_cls * total * d * itemsize)

    # Shared/generic context is passed once as (1, n_ctx, D) — no HBM
    # broadcast to n_cls copies (mirrors torch's .expand view).
    ctx_in = ctx[None] if ctx_shared else ctx
    out_shape = jax.ShapeDtypeStruct((n_cls, total, d), token_prefix.dtype)

    # ---- Fast path: small n_cls -> fully static, unrolled, no tables. ------
    if n_cls <= static_unroll_limit:
        kernel = _make_static_prompt_kernel(
            n_cls, n_ctx, suffix_len, d, name_lens, class_token_position,
            ctx_shared)
        return pl.pallas_call(
            kernel,
            out_shape=out_shape,
            grid_spec=pltpu.PrefetchScalarGridSpec(
                num_scalar_prefetch=0,
                grid=(1,),
                in_specs=[
                    pl.BlockSpec((n_cls, 1, d), lambda t: (0, 0, 0)),
                    pl.BlockSpec((1 if ctx_shared else n_cls, n_ctx, d),
                                 lambda t: (0, 0, 0)),
                    pl.BlockSpec((n_cls, suffix_len, d), lambda t: (0, 0, 0)),
                ],
                out_specs=pl.BlockSpec((n_cls, total, d),
                                       lambda t: (0, 0, 0)),
            ),
            compiler_params=pltpu.CompilerParams(
                dimension_semantics=("arbitrary",)),
            cost_estimate=cost,
        )(token_prefix, ctx_in, token_suffix)

    # ---- Fallback path: tile classes over the grid, tables in SMEM. --------
    # At CLIP scale (seq=77, D=512 f32) C_TILE=8 keeps double-buffered blocks
    # well inside v7x's 64 MiB VMEM as well as v5e/v6e's 128 MiB.
    if class_tile is None:
        class_tile = min(n_cls, 8)
    num_tiles = -(-n_cls // class_tile)
    n_cls_padded = num_tiles * class_tile

    sel_flat, row_flat = _build_gather_tables(
        n_cls, n_ctx, suffix_len, name_lens, class_token_position,
        n_cls_padded)
    sel_arr = jnp.asarray(sel_flat, jnp.int32)
    row_arr = jnp.asarray(row_flat, jnp.int32)

    ctx_cls_block = 1 if ctx_shared else class_tile
    if ctx_shared:
        ctx_index_map = lambda t, sel, row: (0, 0, 0)
    else:
        ctx_index_map = lambda t, sel, row: (t, 0, 0)

    kernel = _make_tiled_prompt_kernel(
        class_tile, total, n_ctx, suffix_len, d, half, class_token_position,
        ctx_shared)

    return pl.pallas_call(
        kernel,
        out_shape=out_shape,
        grid_spec=pltpu.PrefetchScalarGridSpec(
            num_scalar_prefetch=2,
            grid=(num_tiles,),
            in_specs=[
                pl.BlockSpec((class_tile, 1, d), lambda t, sel, row: (t, 0, 0)),
                pl.BlockSpec((ctx_cls_block, n_ctx, d), ctx_index_map),
                pl.BlockSpec((class_tile, suffix_len, d),
                             lambda t, sel, row: (t, 0, 0)),
            ],
            out_specs=pl.BlockSpec((class_tile, total, d),
                                   lambda t, sel, row: (t, 0, 0)),
        ),
        compiler_params=pltpu.CompilerParams(
            dimension_semantics=("parallel",)),
        cost_estimate=cost,
    )(sel_arr, row_arr, token_prefix, ctx_in, token_suffix)


# ----------------------------------------------------------------------------
# Pure-JAX reference mirroring the PyTorch forward.
# ----------------------------------------------------------------------------
def prompt_learner_reference(ctx, token_prefix, token_suffix, name_lens,
                             class_token_position='middle'):
    n_cls = token_prefix.shape[0]
    if ctx.ndim == 2:
        ctx = jnp.broadcast_to(ctx[None], (n_cls,) + ctx.shape)
    n_ctx = ctx.shape[1]
    if class_token_position == 'end':
        return jnp.concatenate([token_prefix, ctx, token_suffix], axis=1)
    prompts = []
    half = n_ctx // 2
    for i in range(n_cls):
        nl = int(name_lens[i])
        prefix_i = token_prefix[i:i + 1]
        class_i = token_suffix[i:i + 1, :nl]
        suffix_i = token_suffix[i:i + 1, nl:]
        if class_token_position == 'middle':
            p = jnp.concatenate([prefix_i, ctx[i:i + 1, :half], class_i,
                                 ctx[i:i + 1, half:], suffix_i], axis=1)
        elif class_token_position == 'front':
            p = jnp.concatenate([prefix_i, class_i, ctx[i:i + 1], suffix_i],
                                axis=1)
        else:
            raise ValueError(class_token_position)
        prompts.append(p)
    return jnp.concatenate(prompts, axis=0)


if __name__ == "__main__":
    # Small synthetic configuration consistent with the module's shapes.
    # (CLIP-IQA uses n_cls=2: "Good photo." / "Bad photo.")
    n_cls = 2
    n_ctx = 8            # half_n_ctx = 4
    ctx_dim = 128        # keep the lane dim a full 128 so stores are unmasked
    suffix_len = 15      # total sequence = 1 + 8 + 15 = 24
    name_lens = [2, 3]   # synthetic tokenizer lengths per class name

    key = jax.random.PRNGKey(0)
    k_ctx, k_pre, k_suf = jax.random.split(key, 3)

    # nn.init.normal_(std=0.02) for ctx; prefix/suffix stand in for the frozen
    # CLIP token_embedding outputs (built in __init__, not the forward).
    ctx_vectors = 0.02 * jax.random.normal(k_ctx, (n_ctx, ctx_dim), jnp.float32)
    token_prefix = jax.random.normal(k_pre, (n_cls, 1, ctx_dim), jnp.float32)
    token_suffix = jax.random.normal(k_suf, (n_cls, suffix_len, ctx_dim),
                                     jnp.float32)

    # 1) Fast static path (default), generic (shared) context, all positions.
    for position in ('middle', 'front', 'end'):
        out = prompt_learner_forward(ctx_vectors, token_prefix, token_suffix,
                                     name_lens, class_token_position=position)
        out = jax.block_until_ready(out)
        ref = prompt_learner_reference(ctx_vectors, token_prefix, token_suffix,
                                       name_lens, class_token_position=position)
        assert out.shape == (n_cls, 1 + n_ctx + suffix_len, ctx_dim), out.shape
        np.testing.assert_allclose(np.asarray(out), np.asarray(ref),
                                   rtol=0, atol=0)

    # 2) Fast static path, class-specific context (class_specify=True).
    ctx_cls = 0.02 * jax.random.normal(k_ctx, (n_cls, n_ctx, ctx_dim),
                                       jnp.float32)
    out = jax.block_until_ready(
        prompt_learner_forward(ctx_cls, token_prefix, token_suffix, name_lens))
    ref = prompt_learner_reference(ctx_cls, token_prefix, token_suffix,
                                   name_lens)
    np.testing.assert_allclose(np.asarray(out), np.asarray(ref), rtol=0, atol=0)

    # 3) Exercise the tiled / SMEM-table fallback path (large-n_cls code path)
    #    by forcing static_unroll_limit=0 and one class per grid step.
    for position in ('middle', 'front', 'end'):
        out = prompt_learner_forward(ctx_vectors, token_prefix, token_suffix,
                                     name_lens,
                                     class_token_position=position,
                                     class_tile=1, static_unroll_limit=0)
        out = jax.block_until_ready(out)
        ref = prompt_learner_reference(ctx_vectors, token_prefix, token_suffix,
                                       name_lens, class_token_position=position)
        np.testing.assert_allclose(np.asarray(out), np.asarray(ref),
                                   rtol=0, atol=0)

    # TODO(synk): tokenizer / CLIP token_embedding construction of
    # token_prefix/token_suffix lives in __init__ (frozen buffers), not in the
    # forward pass, so it is provided as input data here.
    print("KERNEL_OK")
</pallas_src>

<mosaic_0001>
module attributes {stable_mosaic.version = 11 : i64} {
  func.func @kernel(%arg0: i32, %arg1: memref<2x1x128xf32, #tpu.memory_space<vmem>>, %arg2: memref<1x8x128xf32, #tpu.memory_space<vmem>>, %arg3: memref<2x15x128xf32, #tpu.memory_space<vmem>>, %arg4: memref<2x24x128xf32, #tpu.memory_space<vmem>>) attributes {dimension_semantics = [#tpu.dimension_semantics<arbitrary>], iteration_bounds = array<i64: 1>, scalar_prefetch = 0 : i64, scratch_operands = 0 : i64, tpu.core_type = #tpu.core_type<tc>, window_params = [{pipeline_mode = #tpu.pipeline_mode<synchronous>, transform_indices = @transform_0, window_bounds = array<i64: 2, 1, 128>}, {pipeline_mode = #tpu.pipeline_mode<synchronous>, transform_indices = @transform_1, window_bounds = array<i64: 1, 8, 128>}, {pipeline_mode = #tpu.pipeline_mode<synchronous>, transform_indices = @transform_2, window_bounds = array<i64: 2, 15, 128>}, {pipeline_mode = #tpu.pipeline_mode<synchronous>, transform_indices = @transform_3, window_bounds = array<i64: 2, 24, 128>}]} {
    %c0 = arith.constant 0 : index
    %c0_0 = arith.constant 0 : index
    %c0_1 = arith.constant 0 : index
    %0 = vector.load %arg1[%c0, %c0_0, %c0_1] : memref<2x1x128xf32, #tpu.memory_space<vmem>>, vector<2x1x128xf32>
    %c0_2 = arith.constant 0 : index
    %c0_3 = arith.constant 0 : index
    %c0_4 = arith.constant 0 : index
    %1 = vector.load %arg4[%c0_2, %c0_3, %c0_4] : memref<2x24x128xf32, #tpu.memory_space<vmem>>, vector<2x1x128xf32>
    tpu.vector_store %arg4[%c0_2, %c0_3, %c0_4], %0 {strides = array<i32>} : memref<2x24x128xf32, #tpu.memory_space<vmem>>, vector<2x1x128xf32>,
    %c0_5 = arith.constant 0 : index
    %c0_6 = arith.constant 0 : index
    %c0_7 = arith.constant 0 : index
    %2 = vector.load %arg2[%c0_5, %c0_6, %c0_7] : memref<1x8x128xf32, #tpu.memory_space<vmem>>, vector<1x4x128xf32>
    %3 = vector.shape_cast %2 : vector<1x4x128xf32> to vector<1x4x128xf32>
    %4 = vector.broadcast %3 : vector<1x4x128xf32> to vector<2x4x128xf32>
    %c0_8 = arith.constant 0 : index
    %c1 = arith.constant 1 : index
    %c0_9 = arith.constant 0 : index
    %5 = vector.load %arg4[%c0_8, %c1, %c0_9] : memref<2x24x128xf32, #tpu.memory_space<vmem>>, vector<2x4x128xf32>
    tpu.vector_store %arg4[%c0_8, %c1, %c0_9], %4 {strides = array<i32>} : memref<2x24x128xf32, #tpu.memory_space<vmem>>, vector<2x4x128xf32>,
    %c0_10 = arith.constant 0 : index
    %c0_11 = arith.constant 0 : index
    %c0_12 = arith.constant 0 : index
    %6 = vector.load %arg3[%c0_10, %c0_11, %c0_12] : memref<2x15x128xf32, #tpu.memory_space<vmem>>, vector<1x2x128xf32>
    %7 = vector.shape_cast %6 : vector<1x2x128xf32> to vector<2x128xf32>
    %c0_13 = arith.constant 0 : index
    %c5 = arith.constant 5 : index
    %c0_14 = arith.constant 0 : index
    %8 = vector.load %arg4[%c0_13, %c5, %c0_14] : memref<2x24x128xf32, #tpu.memory_space<vmem>>, vector<1x2x128xf32>
    %9 = vector.shape_cast %8 : vector<1x2x128xf32> to vector<2x128xf32>
    %10 = vector.shape_cast %7 : vector<2x128xf32> to vector<1x2x128xf32>
    tpu.vector_store %arg4[%c0_13, %c5, %c0_14], %10 {strides = array<i32>} : memref<2x24x128xf32, #tpu.memory_space<vmem>>, vector<1x2x128xf32>,
    %c0_15 = arith.constant 0 : index
    %c4 = arith.constant 4 : index
    %c0_16 = arith.constant 0 : index
    %11 = vector.load %arg2[%c0_15, %c4, %c0_16] : memref<1x8x128xf32, #tpu.memory_space<vmem>>, vector<1x4x128xf32>
    %12 = vector.shape_cast %11 : vector<1x4x128xf32> to vector<4x128xf32>
    %c0_17 = arith.constant 0 : index
    %c7 = arith.constant 7 : index
    %c0_18 = arith.constant 0 : index
    %13 = vector.load %arg4[%c0_17, %c7, %c0_18] : memref<2x24x128xf32, #tpu.memory_space<vmem>>, vector<1x4x128xf32>
    %14 = vector.shape_cast %13 : vector<1x4x128xf32> to vector<4x128xf32>
    %15 = vector.shape_cast %12 : vector<4x128xf32> to vector<1x4x128xf32>
    tpu.vector_store %arg4[%c0_17, %c7, %c0_18], %15 {strides = array<i32>} : memref<2x24x128xf32, #tpu.memory_space<vmem>>, vector<1x4x128xf32>,
    %c0_19 = arith.constant 0 : index
    %c2 = arith.constant 2 : index
    %c0_20 = arith.constant 0 : index
    %16 = vector.load %arg3[%c0_19, %c2, %c0_20] : memref<2x15x128xf32, #tpu.memory_space<vmem>>, vector<1x13x128xf32>
    %17 = vector.shape_cast %16 : vector<1x13x128xf32> to vector<13x128xf32>
    %c0_21 = arith.constant 0 : index
    %c11 = arith.constant 11 : index
    %c0_22 = arith.constant 0 : index
    %18 = vector.load %arg4[%c0_21, %c11, %c0_22] : memref<2x24x128xf32, #tpu.memory_space<vmem>>, vector<1x13x128xf32>
    %19 = vector.shape_cast %18 : vector<1x13x128xf32> to vector<13x128xf32>
    %20 = vector.shape_cast %17 : vector<13x128xf32> to vector<1x13x128xf32>
    tpu.vector_store %arg4[%c0_21, %c11, %c0_22], %20 {strides = array<i32>} : memref<2x24x128xf32, #tpu.memory_space<vmem>>, vector<1x13x128xf32>,
    %c1_23 = arith.constant 1 : index
    %c0_24 = arith.constant 0 : index
    %c0_25 = arith.constant 0 : index
    %21 = vector.load %arg3[%c1_23, %c0_24, %c0_25] : memref<2x15x128xf32, #tpu.memory_space<vmem>>, vector<1x3x128xf32>
    %22 = vector.shape_cast %21 : vector<1x3x128xf32> to vector<3x128xf32>
    %c1_26 = arith.constant 1 : index
    %c5_27 = arith.constant 5 : index
    %c0_28 = arith.constant 0 : index
    %23 = vector.load %arg4[%c1_26, %c5_27, %c0_28] : memref<2x24x128xf32, #tpu.memory_space<vmem>>, vector<1x3x128xf32>
    %24 = vector.shape_cast %23 : vector<1x3x128xf32> to vector<3x128xf32>
    %25 = vector.shape_cast %22 : vector<3x128xf32> to vector<1x3x128xf32>
    tpu.vector_store %arg4[%c1_26, %c5_27, %c0_28], %25 {strides = array<i32>} : memref<2x24x128xf32, #tpu.memory_space<vmem>>, vector<1x3x128xf32>,
    %c0_29 = arith.constant 0 : index
    %c4_30 = arith.constant 4 : index
    %c0_31 = arith.constant 0 : index
    %26 = vector.load %arg2[%c0_29, %c4_30, %c0_31] : memref<1x8x128xf32, #tpu.memory_space<vmem>>, vector<1x4x128xf32>
    %27 = vector.shape_cast %26 : vector<1x4x128xf32> to vector<4x128xf32>
    %c1_32 = arith.constant 1 : index
    %c8 = arith.constant 8 : index
    %c0_33 = arith.constant 0 : index
    %28 = vector.load %arg4[%c1_32, %c8, %c0_33] : memref<2x24x128xf32, #tpu.memory_space<vmem>>, vector<1x4x128xf32>
    %29 = vector.shape_cast %28 : vector<1x4x128xf32> to vector<4x128xf32>
    %30 = vector.shape_cast %27 : vector<4x128xf32> to vector<1x4x128xf32>
    tpu.vector_store %arg4[%c1_32, %c8, %c0_33], %30 {strides = array<i32>} : memref<2x24x128xf32, #tpu.memory_space<vmem>>, vector<1x4x128xf32>,
    %c1_34 = arith.constant 1 : index
    %c3 = arith.constant 3 : index
    %c0_35 = arith.constant 0 : index
    %31 = vector.load %arg3[%c1_34, %c3, %c0_35] : memref<2x15x128xf32, #tpu.memory_space<vmem>>, vector<1x12x128xf32>
    %32 = vector.shape_cast %31 : vector<1x12x128xf32> to vector<12x128xf32>
    %c1_36 = arith.constant 1 : index
    %c12 = arith.constant 12 : index
    %c0_37 = arith.constant 0 : index
    %33 = vector.load %arg4[%c1_36, %c12, %c0_37] : memref<2x24x128xf32, #tpu.memory_space<vmem>>, vector<1x12x128xf32>
    %34 = vector.shape_cast %33 : vector<1x12x128xf32> to vector<12x128xf32>
    %35 = vector.shape_cast %32 : vector<12x128xf32> to vector<1x12x128xf32>
    tpu.vector_store %arg4[%c1_36, %c12, %c0_37], %35 {strides = array<i32>} : memref<2x24x128xf32, #tpu.memory_space<vmem>>, vector<1x12x128xf32>,
    return
  }
  func.func @transform_0(%arg0: i32) -> (i32, i32, i32) {
    %c0_i32 = arith.constant 0 : i32
    %c0_i32_0 = arith.constant 0 : i32
    %c0_i32_1 = arith.constant 0 : i32
    %c0_i32_2 = arith.constant 0 : i32
    return %c0_i32, %c0_i32_0, %c0_i32_1 : i32, i32, i32
  }
  func.func @transform_1(%arg0: i32) -> (i32, i32, i32) {
    %c0_i32 = arith.constant 0 : i32
    %c0_i32_0 = arith.constant 0 : i32
    %c0_i32_1 = arith.constant 0 : i32
    %c0_i32_2 = arith.constant 0 : i32
    return %c0_i32, %c0_i32_0, %c0_i32_1 : i32, i32, i32
  }
  func.func @transform_2(%arg0: i32) -> (i32, i32, i32) {
    %c0_i32 = arith.constant 0 : i32
    %c0_i32_0 = arith.constant 0 : i32
    %c0_i32_1 = arith.constant 0 : i32
    %c0_i32_2 = arith.constant 0 : i32
    return %c0_i32, %c0_i32_0, %c0_i32_1 : i32, i32, i32
  }
  func.func @transform_3(%arg0: i32) -> (i32, i32, i32) {
    %c0_i32 = arith.constant 0 : i32
    %c0_i32_0 = arith.constant 0 : i32
    %c0_i32_1 = arith.constant 0 : i32
    %c0_i32_2 = arith.constant 0 : i32
    return %c0_i32, %c0_i32_0, %c0_i32_1 : i32, i32, i32
  }
}

</mosaic_0001>

<llo_original>
// kernel: tpu_custom_call.1
$region0: #{tpu_custom_call.1}
  #allocation0 [shape = 'u32[]', space=smem, size = 0x4, offset = 0x4, fixed_abs, tag = 'smem constant byte address 0x4 - core index']
  #allocation1 [shape = 'u32[144,128]{1,0:T(1,128)}', space=vmem, size = 0x12000, scoped, tag = 'internal scratch']
  %s0 = inlined_call_operand.vmem [shape: f32[2,1,128], index: 0, kind: input, shape index: {}]
  %s1 = inlined_call_operand.vmem [shape: f32[1,8,128], index: 1, kind: input, shape index: {}]
  %s2 = inlined_call_operand.vmem [shape: f32[2,15,128], index: 2, kind: input, shape index: {}]
  %s3 = inlined_call_operand.hbm [shape: f32[2,24,128], index: 3, kind: output, shape index: {}]
  %s4 = sld [smem:[#allocation0]]
  $region22: #{tpu_custom_call.1} parent=0
    _
  %s6 = ssub.s32 1, %s4
  %s7 = scalar_select 0, %s6, %s4
  $region1: #{tpu_custom_call.1} parent=0
    #allocation2 [shape = 'u8[24576]{0}', space=vmem, size = 0x6000, scoped, tag = 'output window, operand 0, single buffered']
    #allocation3 [shape = 's32[1]{0}', space=sflag, size = 0x4, scoped, tag = 'scoped memory for tpu_custom_call.1']
    %8 = vsyncpa [#allocation3], 0
    // Predicated region
    $region2: #{tpu_custom_call.1} parent=1 // pred_check
      _
    $region3: #{tpu_custom_call.1} parent=1 // pred_check_branch
      %10 = sbr.rel (0) target = $region5
    $region4: #{tpu_custom_call.1} parent=1 // pred_region
      _
    $region5: #{tpu_custom_call.1} parent=1 // pred_fallthru
      _
    // Predicated region
    $region6: #{tpu_custom_call.1} parent=1 // pred_check
      _
    $region7: #{tpu_custom_call.1} parent=1 // pred_check_branch
      %12 = sbr.rel (0) target = $region9
    $region8: #{tpu_custom_call.1} parent=1 // pred_region
      _
    $region9: #{tpu_custom_call.1} parent=1 // pred_fallthru
      _
    // Predicated region
    $region10: #{tpu_custom_call.1} parent=1 // pred_check
      _
    $region11: #{tpu_custom_call.1} parent=1 // pred_check_branch
      %14 = sbr.rel (0) target = $region13
    $region12: #{tpu_custom_call.1} parent=1 // pred_region
      _
    $region13: #{tpu_custom_call.1} parent=1 // pred_fallthru
      _
    %v15 = vld [vmem:[%s0] sm:$0x1]
    %v16 = vld [vmem:[%s0 + $0x1] sm:$0x1]
    %17 = vst [vmem:[#allocation2] sm:$0x1] %v15
    %18 = vst [vmem:[#allocation2 + $0x18] sm:$0x1] %v16
    %v19 = vld [vmem:[%s1] sm:$0xf]
    %20 = vst [vmem:[#allocation2 + $0x1] sm:$0xf] %v19
    %21 = vst [vmem:[#allocation2 + $0x19] sm:$0xf] %v19
    %v22 = vld [vmem:[%s2] sm:$0x3]
    %23 = vst [vmem:[#allocation2 + $0x5] sm:$0x3] %v22
    %v24 = vld [vmem:[%s1 + $0x4] sm:$0xf]
    %25 = vst [vmem:[#allocation2 + $0x7] sm:$0xf] %v24
    %v26 = vld [vmem:[%s2 + $0x2] sm:$0xff]
    %v27 = vld [vmem:[%s2 + $0xa] sm:$0x1f]
    %28 = vst [vmem:[#allocation2 + $0xb] sm:$0xff] %v26
    %29 = vst [vmem:[#allocation2 + $0x13] sm:$0x1f] %v27
    %s30 = scalar_lea.vmem %s2, 16
    %v31 = vld [vmem:[%s30] sm:$0x7]
    %s32 = scalar_lea.vmem [#allocation2], 24
    %33 = vst [vmem:[%s32 + $0x5] sm:$0x7] %v31
    %v34 = vld [vmem:[%s1 + $0x4] sm:$0xf]
    %35 = vst [vmem:[%s32 + $0x8] sm:$0xf] %v34
    %v36 = vld [vmem:[%s30 + $0x3] sm:$0xff]
    %v37 = vld [vmem:[%s30 + $0xb] sm:$0xf]
    %38 = vst [vmem:[%s32 + $0xc] sm:$0xff] %v36
    %39 = vst [vmem:[%s32 + $0x14] sm:$0xf] %v37
    // Predicated region
    $region14: #{tpu_custom_call.1} parent=1 // pred_check
      _
    $region15: #{tpu_custom_call.1} parent=1 // pred_check_branch
      %41 = sbr.rel (0) target = $region17
    $region16: #{tpu_custom_call.1} parent=1 // pred_region
      %s43 = ssub.s32 768, 768
      %44 = vsyncadd [#allocation3], %s43
      %s45 = sshll.u32 [#allocation2], 4
      %s46 = int_to_ptr.vmem [resolvable:$true] %s45
      %51 = dma.vmem_to_hbm [thread:$0]  %s46, 768, %s3, [#allocation3], 128, 128, 8
    $region17: #{tpu_custom_call.1} parent=1 // pred_fallthru
      _
    // Predicated region
    $region18: #{tpu_custom_call.1} parent=1 // pred_check
      _
    $region19: #{tpu_custom_call.1} parent=1 // pred_check_branch
      %53 = sbr.rel (0) target = $region21
    $region20: #{tpu_custom_call.1} parent=1 // pred_region
      %54 = dma.done [#allocation3], 768
    $region21: #{tpu_custom_call.1} parent=1 // pred_fallthru
      _
    %55 = vsyncpa [#allocation3], 1

</llo_original>
